<compile_context>
chip_gen: v6e
topology: v6e:2x2x1
jax: 0.10.0
libtpu: 0.0.40
codegen_flags: <defaults>
</compile_context>

<pallas_src>
import functools

import jax
import jax.numpy as jnp
from jax.experimental import pallas as pl
from jax.experimental.pallas import tpu as pltpu

LANE = 128     # lane (last-dim) multiple for dense MXU use / unmasked stores
SUBLANE = 8    # sublane (second-to-last dim) multiple


def _round_up(n, m):
    return ((n + m - 1) // m) * m


def _cdiv(a, b):
    return -(-a // b)


def _vmem_capacity_bytes():
    """Physical VMEM on this generation; conservative 64 MiB if unqueryable."""
    try:
        return int(pltpu.get_tpu_info().vmem_capacity_bytes)
    except Exception:
        return 64 << 20


# ----------------------------------------------------------------------------
# Kernels
# ----------------------------------------------------------------------------
def _fnn_kernel_fused(x_ref, w1_ref, b1_ref, w2_ref, b2_ref, w3_ref, b3_ref,
                      o_ref):
    """Small-tile path: chain the three matmuls without VMEM scratch."""
    cdt = w1_ref.dtype
    h1 = jnp.dot(x_ref[...], w1_ref[...], preferred_element_type=jnp.float32)
    h1 = jnp.maximum(h1 + b1_ref[...], 0.0).astype(cdt)
    h2 = jnp.dot(h1, w2_ref[...], preferred_element_type=jnp.float32)
    h2 = jnp.maximum(h2 + b2_ref[...], 0.0).astype(cdt)
    out = jnp.dot(h2, w3_ref[...], preferred_element_type=jnp.float32)
    o_ref[...] = (out + b3_ref[...]).astype(o_ref.dtype)


def _fnn_kernel_scratch(x_ref, w1_ref, b1_ref, w2_ref, b2_ref, w3_ref, b3_ref,
                        o_ref, h1_ref, h2_ref):
    """Large-tile path: h1/h2 live in compute-dtype VMEM scratch to bound vregs."""
    h1 = jnp.dot(x_ref[...], w1_ref[...], preferred_element_type=jnp.float32)
    h1_ref[...] = jnp.maximum(h1 + b1_ref[...], 0.0).astype(h1_ref.dtype)
    h2 = jnp.dot(h1_ref[...], w2_ref[...], preferred_element_type=jnp.float32)
    h2_ref[...] = jnp.maximum(h2 + b2_ref[...], 0.0).astype(h2_ref.dtype)
    out = jnp.dot(h2_ref[...], w3_ref[...], preferred_element_type=jnp.float32)
    o_ref[...] = (out + b3_ref[...]).astype(o_ref.dtype)


# ----------------------------------------------------------------------------
# One-time parameter preparation
# ----------------------------------------------------------------------------
def prepare_params(params, compute_dtype=jnp.bfloat16):
    """Transpose PyTorch-convention (out, in) weights to (in, out) and zero-pad
    every feature dim to a multiple of 128 lanes.  Zero-padded lanes contribute
    exactly zero to each matmul, so semantics are unchanged.  bf16 by default
    (native MXU dtype on all generations); biases stay f32."""
    def prep(w, b):
        fo, fi = w.shape
        fip, fop = _round_up(fi, LANE), _round_up(fo, LANE)
        wt = jnp.zeros((fip, fop), compute_dtype).at[:fi, :fo].set(
            w.T.astype(compute_dtype))
        br = jnp.zeros((1, fop), jnp.float32).at[0, :fo].set(b.astype(jnp.float32))
        return wt, br

    w1, b1 = prep(params["w1"], params["b1"])
    w2, b2 = prep(params["w2"], params["b2"])
    w3, b3 = prep(params["w3"], params["b3"])
    return (w1, b1, w2, b2, w3, b3)


# ----------------------------------------------------------------------------
# Forward
# ----------------------------------------------------------------------------
@functools.partial(
    jax.jit,
    static_argnames=("out_size", "tm", "use_scratch", "single_buffer_weights",
                     "vmem_limit", "out_dtype"))
def _fnn_forward_impl(x, w1, b1, w2, b2, w3, b3, *, out_size, tm, use_scratch,
                      single_buffer_weights, vmem_limit, out_dtype):
    batch, in_size = x.shape
    in_p, h1_p = w1.shape
    h2_p = w2.shape[1]
    out_p = w3.shape[1]
    compute_dtype = w1.dtype
    itemsize = jnp.dtype(compute_dtype).itemsize
    out_itemsize = jnp.dtype(out_dtype).itemsize

    batch_p = _round_up(batch, tm)
    grid = (batch_p // tm,)

    # Pad/cast x only when needed (aligned case skips an extra HBM round trip).
    if batch_p == batch and in_p == in_size:
        x_p = x.astype(compute_dtype)
    else:
        x_p = jnp.zeros((batch_p, in_p), compute_dtype).at[:batch, :in_size].set(
            x.astype(compute_dtype))

    resident = lambda i: (0, 0)  # same block every step -> stays VMEM-resident
    if single_buffer_weights:
        # Constant block: a single buffer is enough; halves resident weight VMEM.
        wspec = lambda shape: pl.BlockSpec(shape, resident,
                                           pipeline_mode=pl.Buffered(1))
    else:
        wspec = lambda shape: pl.BlockSpec(shape, resident)

    in_specs = [
        pl.BlockSpec((tm, in_p), lambda i: (i, 0)),   # x: streamed per tile
        wspec((in_p, h1_p)), wspec((1, h1_p)),
        wspec((h1_p, h2_p)), wspec((1, h2_p)),
        wspec((h2_p, out_p)), wspec((1, out_p)),
    ]

    if use_scratch:
        kernel = _fnn_kernel_scratch
        scratch_shapes = [pltpu.VMEM((tm, h1_p), compute_dtype),
                          pltpu.VMEM((tm, h2_p), compute_dtype)]
    else:
        kernel = _fnn_kernel_fused
        scratch_shapes = []

    flops = 2 * batch_p * (in_p * h1_p + h1_p * h2_p + h2_p * out_p)
    bytes_accessed = (
        batch_p * in_p * itemsize                                     # x
        + (in_p * h1_p + h1_p * h2_p + h2_p * out_p) * itemsize       # weights
        + (h1_p + h2_p + out_p) * 4                                   # biases
        + batch_p * out_p * out_itemsize                              # output
    )

    out_full = pl.pallas_call(
        kernel,
        out_shape=jax.ShapeDtypeStruct((batch_p, out_p), out_dtype),
        grid=grid,
        in_specs=in_specs,
        out_specs=pl.BlockSpec((tm, out_p), lambda i: (i, 0)),
        scratch_shapes=scratch_shapes,
        compiler_params=pltpu.CompilerParams(
            dimension_semantics=("parallel",),
            vmem_limit_bytes=vmem_limit,
        ),
        cost_estimate=pl.CostEstimate(
            flops=flops, transcendentals=0, bytes_accessed=bytes_accessed),
    )(x_p, w1, b1, w2, b2, w3, b3)

    if batch_p == batch and out_p == out_size:
        return out_full
    return out_full[:batch, :out_size]


_SINGLE_BUFFER_WEIGHTS_OK = None  # lazily resolved once per process


def fnn_forward(x, w1, b1, w2, b2, w3, b3, *, out_size, batch_tile=None,
                out_dtype=None):
    """Forward pass.  Weights must come from prepare_params()."""
    global _SINGLE_BUFFER_WEIGHTS_OK

    batch, _ = x.shape
    in_p, h1_p = w1.shape
    h2_p = w2.shape[1]
    out_p = w3.shape[1]
    compute_dtype = w1.dtype
    itemsize = jnp.dtype(compute_dtype).itemsize
    out_dtype = compute_dtype if out_dtype is None else jnp.dtype(out_dtype)
    out_itemsize = jnp.dtype(out_dtype).itemsize

    cap = _vmem_capacity_bytes()
    if batch_tile is None:
        # Bigger streamed tiles on 128 MiB parts (v5e/v6e); modest on v7x (64 MiB/TC).
        batch_tile = 512 if cap >= (100 << 20) else 256

    # >= 2 grid steps whenever the batch allows, so ("parallel",) can shard the
    # grid across v7x's two TensorCores.
    n_tiles = max(2, _cdiv(batch, batch_tile))
    tm = min(_round_up(_cdiv(batch, n_tiles), SUBLANE), _round_up(batch, SUBLANE))

    # Small tiles skip the h1/h2 scratch round trip entirely.
    use_scratch = tm > 128

    # VMEM budget (conservatively assume double-buffered weights for the limit),
    # capped at ~85% of this generation's physical VMEM instead of a 64 MiB clamp.
    weight_bytes = (in_p * h1_p + h1_p * h2_p + h2_p * out_p) * itemsize
    bias_bytes = (h1_p + h2_p + out_p) * 4
    need = (2 * (weight_bytes + bias_bytes)
            + 2 * tm * (in_p * itemsize + out_p * out_itemsize)
            + (tm * (h1_p + h2_p) * itemsize if use_scratch else 0))
    vmem_limit = int(min(max(need + (4 << 20), 32 << 20), int(cap * 0.85)))

    args = (x, w1, b1, w2, b2, w3, b3)
    static = dict(out_size=out_size, tm=tm, use_scratch=use_scratch,
                  vmem_limit=vmem_limit, out_dtype=out_dtype)

    if _SINGLE_BUFFER_WEIGHTS_OK is None:
        if not hasattr(pl, "Buffered"):
            _SINGLE_BUFFER_WEIGHTS_OK = False
        else:
            try:
                out = _fnn_forward_impl(*args, single_buffer_weights=True, **static)
                _SINGLE_BUFFER_WEIGHTS_OK = True
                return out
            except Exception:
                # This build rejects Buffered(1); fall back to default buffering.
                _SINGLE_BUFFER_WEIGHTS_OK = False

    return _fnn_forward_impl(*args,
                             single_buffer_weights=_SINGLE_BUFFER_WEIGHTS_OK,
                             **static)


# ----------------------------------------------------------------------------
# Reference + test
# ----------------------------------------------------------------------------
def init_params(key, input_size, hidden_size1, hidden_size2, output_size):
    """Deterministic nn.Linear-style init (uniform(-1/sqrt(fan_in), 1/sqrt(fan_in)))."""
    keys = jax.random.split(key, 6)

    def linear(kw, kb, fan_in, fan_out):
        bound = 1.0 / jnp.sqrt(jnp.float32(fan_in))
        w = jax.random.uniform(kw, (fan_out, fan_in), jnp.float32, -bound, bound)
        b = jax.random.uniform(kb, (fan_out,), jnp.float32, -bound, bound)
        return w, b

    w1, b1 = linear(keys[0], keys[1], input_size, hidden_size1)
    w2, b2 = linear(keys[2], keys[3], hidden_size1, hidden_size2)
    w3, b3 = linear(keys[4], keys[5], hidden_size2, output_size)
    return {"w1": w1, "b1": b1, "w2": w2, "b2": b2, "w3": w3, "b3": b3}


def fnn_reference(x, p):
    h1 = jnp.maximum(x @ p["w1"].T + p["b1"], 0.0)
    h2 = jnp.maximum(h1 @ p["w2"].T + p["b2"], 0.0)
    return h2 @ p["w3"].T + p["b3"]


def fnn_reference_bf16(x, p):
    """Simulates the kernel's bf16 path: bf16 operands, f32 accumulation."""
    cd = jnp.bfloat16

    def lin(h, w, b):
        return jnp.dot(h.astype(cd), w.T.astype(cd),
                       preferred_element_type=jnp.float32) + b

    h1 = jnp.maximum(lin(x, p["w1"], p["b1"]), 0.0).astype(cd)
    h2 = jnp.maximum(lin(h1, p["w2"], p["b2"]), 0.0).astype(cd)
    return lin(h2, p["w3"], p["b3"])


if __name__ == "__main__":
    key = jax.random.PRNGKey(0)
    k_x, k_p, k_x2, k_p2 = jax.random.split(key, 4)

    # Case 1: module-scale shapes (batch=8, 32 -> 64 -> 32 -> 8), explicit f32
    # path (tight numeric check; exercises fused small-tile kernel).
    batch, in_s, h1_s, h2_s, out_s = 8, 32, 64, 32, 8
    x = jax.random.normal(k_x, (batch, in_s), jnp.float32)
    params = init_params(k_p, in_s, h1_s, h2_s, out_s)
    prepped = prepare_params(params, compute_dtype=jnp.float32)
    out = fnn_forward(x, *prepped, out_size=out_s)
    jax.block_until_ready(out)
    ref = fnn_reference(x, params)
    assert out.shape == (batch, out_s)
    assert out.dtype == jnp.float32
    assert jnp.allclose(out, ref, atol=1e-5, rtol=1e-5)

    # Case 2: default bf16 path, non-aligned shapes exercising the batch grid,
    # padding, and the large-tile scratch kernel. Compared against a bf16-aware
    # reference with bf16 tolerances.
    batch2, in2, h12, h22, out2 = 300, 96, 160, 96, 10
    x2 = jax.random.normal(k_x2, (batch2, in2), jnp.float32)
    params2 = init_params(k_p2, in2, h12, h22, out2)
    prepped2 = prepare_params(params2)                 # bf16 weights by default
    out2_arr = fnn_forward(x2, *prepped2, out_size=out2)
    jax.block_until_ready(out2_arr)
    ref2 = fnn_reference_bf16(x2, params2)
    assert out2_arr.shape == (batch2, out2)
    assert out2_arr.dtype == jnp.bfloat16
    assert jnp.allclose(out2_arr.astype(jnp.float32), ref2, atol=3e-2, rtol=3e-2)

    print("KERNEL_OK")
</pallas_src>

<mosaic_0001>
module attributes {stable_mosaic.version = 11 : i64} {
  func.func @_fnn_kernel_fused(%arg0: i32, %arg1: memref<8x128xf32, #tpu.memory_space<vmem>>, %arg2: memref<128x128xf32, #tpu.memory_space<vmem>>, %arg3: memref<1x128xf32, #tpu.memory_space<vmem>>, %arg4: memref<128x128xf32, #tpu.memory_space<vmem>>, %arg5: memref<1x128xf32, #tpu.memory_space<vmem>>, %arg6: memref<128x128xf32, #tpu.memory_space<vmem>>, %arg7: memref<1x128xf32, #tpu.memory_space<vmem>>, %arg8: memref<8x128xf32, #tpu.memory_space<vmem>>) attributes {dimension_semantics = [#tpu.dimension_semantics<parallel>], iteration_bounds = array<i64: 1>, scalar_prefetch = 0 : i64, scratch_operands = 0 : i64, tpu.core_type = #tpu.core_type<tc>, window_params = [{transform_indices = @transform_0, window_bounds = array<i64: 8, 128>}, {pipeline_mode = #tpu.pipeline_mode<synchronous>, transform_indices = @transform_1, window_bounds = array<i64: 128, 128>}, {pipeline_mode = #tpu.pipeline_mode<synchronous>, transform_indices = @transform_2, window_bounds = array<i64: 1, 128>}, {pipeline_mode = #tpu.pipeline_mode<synchronous>, transform_indices = @transform_3, window_bounds = array<i64: 128, 128>}, {pipeline_mode = #tpu.pipeline_mode<synchronous>, transform_indices = @transform_4, window_bounds = array<i64: 1, 128>}, {pipeline_mode = #tpu.pipeline_mode<synchronous>, transform_indices = @transform_5, window_bounds = array<i64: 128, 128>}, {pipeline_mode = #tpu.pipeline_mode<synchronous>, transform_indices = @transform_6, window_bounds = array<i64: 1, 128>}, {transform_indices = @transform_7, window_bounds = array<i64: 8, 128>}]} {
    %c0 = arith.constant 0 : index
    %c0_0 = arith.constant 0 : index
    %0 = vector.load %arg1[%c0, %c0_0] : memref<8x128xf32, #tpu.memory_space<vmem>>, vector<8x128xf32>
    %c0_1 = arith.constant 0 : index
    %c0_2 = arith.constant 0 : index
    %1 = vector.load %arg2[%c0_1, %c0_2] : memref<128x128xf32, #tpu.memory_space<vmem>>, vector<128x128xf32>
    %cst = arith.constant dense<0.000000e+00> : vector<8x128xf32>
    %2 = tpu.matmul %0, %1, %cst {dimension_numbers = #tpu.dot_dimension_numbers<[1], [0], [0], [1], [0, 0, 1, 1], [], []>} : vector<8x128xf32>, vector<128x128xf32>, vector<8x128xf32> -> vector<8x128xf32>
    %c0_3 = arith.constant 0 : index
    %c0_4 = arith.constant 0 : index
    %3 = vector.load %arg3[%c0_3, %c0_4] : memref<1x128xf32, #tpu.memory_space<vmem>>, vector<1x128xf32>
    %4 = vector.broadcast %3 : vector<1x128xf32> to vector<8x128xf32>
    %5 = arith.addf %2, %4 : vector<8x128xf32>
    %cst_5 = arith.constant 0.000000e+00 : f32
    %6 = vector.broadcast %cst_5 : f32 to vector<8x128xf32>
    %7 = arith.maximumf %5, %6 : vector<8x128xf32>
    %c0_6 = arith.constant 0 : index
    %c0_7 = arith.constant 0 : index
    %8 = vector.load %arg4[%c0_6, %c0_7] : memref<128x128xf32, #tpu.memory_space<vmem>>, vector<128x128xf32>
    %cst_8 = arith.constant dense<0.000000e+00> : vector<8x128xf32>
    %9 = tpu.matmul %7, %8, %cst_8 {dimension_numbers = #tpu.dot_dimension_numbers<[1], [0], [0], [1], [0, 0, 1, 1], [], []>} : vector<8x128xf32>, vector<128x128xf32>, vector<8x128xf32> -> vector<8x128xf32>
    %c0_9 = arith.constant 0 : index
    %c0_10 = arith.constant 0 : index
    %10 = vector.load %arg5[%c0_9, %c0_10] : memref<1x128xf32, #tpu.memory_space<vmem>>, vector<1x128xf32>
    %11 = vector.broadcast %10 : vector<1x128xf32> to vector<8x128xf32>
    %12 = arith.addf %9, %11 : vector<8x128xf32>
    %cst_11 = arith.constant 0.000000e+00 : f32
    %13 = vector.broadcast %cst_11 : f32 to vector<8x128xf32>
    %14 = arith.maximumf %12, %13 : vector<8x128xf32>
    %c0_12 = arith.constant 0 : index
    %c0_13 = arith.constant 0 : index
    %15 = vector.load %arg6[%c0_12, %c0_13] : memref<128x128xf32, #tpu.memory_space<vmem>>, vector<128x128xf32>
    %cst_14 = arith.constant dense<0.000000e+00> : vector<8x128xf32>
    %16 = tpu.matmul %14, %15, %cst_14 {dimension_numbers = #tpu.dot_dimension_numbers<[1], [0], [0], [1], [0, 0, 1, 1], [], []>} : vector<8x128xf32>, vector<128x128xf32>, vector<8x128xf32> -> vector<8x128xf32>
    %c0_15 = arith.constant 0 : index
    %c0_16 = arith.constant 0 : index
    %17 = vector.load %arg7[%c0_15, %c0_16] : memref<1x128xf32, #tpu.memory_space<vmem>>, vector<1x128xf32>
    %18 = vector.broadcast %17 : vector<1x128xf32> to vector<8x128xf32>
    %19 = arith.addf %16, %18 : vector<8x128xf32>
    %c0_17 = arith.constant 0 : index
    %c0_18 = arith.constant 0 : index
    %20 = vector.load %arg8[%c0_17, %c0_18] : memref<8x128xf32, #tpu.memory_space<vmem>>, vector<8x128xf32>
    tpu.vector_store %arg8[%c0_17, %c0_18], %19 {strides = array<i32>} : memref<8x128xf32, #tpu.memory_space<vmem>>, vector<8x128xf32>,
    return
  }
  func.func @transform_0(%arg0: i32) -> (i32, i32) {
    %c0_i32 = arith.constant 0 : i32
    %c0_i32_0 = arith.constant 0 : i32
    return %arg0, %c0_i32 : i32, i32
  }
  func.func @transform_1(%arg0: i32) -> (i32, i32) {
    %c0_i32 = arith.constant 0 : i32
    %c0_i32_0 = arith.constant 0 : i32
    %c0_i32_1 = arith.constant 0 : i32
    return %c0_i32, %c0_i32_0 : i32, i32
  }
  func.func @transform_2(%arg0: i32) -> (i32, i32) {
    %c0_i32 = arith.constant 0 : i32
    %c0_i32_0 = arith.constant 0 : i32
    %c0_i32_1 = arith.constant 0 : i32
    return %c0_i32, %c0_i32_0 : i32, i32
  }
  func.func @transform_3(%arg0: i32) -> (i32, i32) {
    %c0_i32 = arith.constant 0 : i32
    %c0_i32_0 = arith.constant 0 : i32
    %c0_i32_1 = arith.constant 0 : i32
    return %c0_i32, %c0_i32_0 : i32, i32
  }
  func.func @transform_4(%arg0: i32) -> (i32, i32) {
    %c0_i32 = arith.constant 0 : i32
    %c0_i32_0 = arith.constant 0 : i32
    %c0_i32_1 = arith.constant 0 : i32
    return %c0_i32, %c0_i32_0 : i32, i32
  }
  func.func @transform_5(%arg0: i32) -> (i32, i32) {
    %c0_i32 = arith.constant 0 : i32
    %c0_i32_0 = arith.constant 0 : i32
    %c0_i32_1 = arith.constant 0 : i32
    return %c0_i32, %c0_i32_0 : i32, i32
  }
  func.func @transform_6(%arg0: i32) -> (i32, i32) {
    %c0_i32 = arith.constant 0 : i32
    %c0_i32_0 = arith.constant 0 : i32
    %c0_i32_1 = arith.constant 0 : i32
    return %c0_i32, %c0_i32_0 : i32, i32
  }
  func.func @transform_7(%arg0: i32) -> (i32, i32) {
    %c0_i32 = arith.constant 0 : i32
    %c0_i32_0 = arith.constant 0 : i32
    return %arg0, %c0_i32 : i32, i32
  }
}

module attributes {stable_mosaic.version = 11 : i64} {
  func.func @_fnn_kernel_fused(%arg0: i32, %arg1: memref<8x128xf32, #tpu.memory_space<vmem>>, %arg2: memref<128x128xf32, #tpu.memory_space<vmem>>, %arg3: memref<1x128xf32, #tpu.memory_space<vmem>>, %arg4: memref<128x128xf32, #tpu.memory_space<vmem>>, %arg5: memref<1x128xf32, #tpu.memory_space<vmem>>, %arg6: memref<128x128xf32, #tpu.memory_space<vmem>>, %arg7: memref<1x128xf32, #tpu.memory_space<vmem>>, %arg8: memref<8x128xf32, #tpu.memory_space<vmem>>) attributes {dimension_semantics = [#tpu.dimension_semantics<parallel>], iteration_bounds = array<i64: 1>, scalar_prefetch = 0 : i64, scratch_operands = 0 : i64, tpu.core_type = #tpu.core_type<tc>, window_params = [{transform_indices = @transform_0, window_bounds = array<i64: 8, 128>}, {pipeline_mode = #tpu.pipeline_mode<synchronous>, transform_indices = @transform_1, window_bounds = array<i64: 128, 128>}, {pipeline_mode = #tpu.pipeline_mode<synchronous>, transform_indices = @transform_2, window_bounds = array<i64: 1, 128>}, {pipeline_mode = #tpu.pipeline_mode<synchronous>, transform_indices = @transform_3, window_bounds = array<i64: 128, 128>}, {pipeline_mode = #tpu.pipeline_mode<synchronous>, transform_indices = @transform_4, window_bounds = array<i64: 1, 128>}, {pipeline_mode = #tpu.pipeline_mode<synchronous>, transform_indices = @transform_5, window_bounds = array<i64: 128, 128>}, {pipeline_mode = #tpu.pipeline_mode<synchronous>, transform_indices = @transform_6, window_bounds = array<i64: 1, 128>}, {transform_indices = @transform_7, window_bounds = array<i64: 8, 128>}]} {
    %c0 = arith.constant 0 : index
    %c0_0 = arith.constant 0 : index
    %0 = vector.load %arg1[%c0, %c0_0] : memref<8x128xf32, #tpu.memory_space<vmem>>, vector<8x128xf32>
    %c0_1 = arith.constant 0 : index
    %c0_2 = arith.constant 0 : index
    %1 = vector.load %arg2[%c0_1, %c0_2] : memref<128x128xf32, #tpu.memory_space<vmem>>, vector<128x128xf32>
    %cst = arith.constant dense<0.000000e+00> : vector<8x128xf32>
    %2 = tpu.matmul %0, %1, %cst {dimension_numbers = #tpu.dot_dimension_numbers<[1], [0], [0], [1], [0, 0, 1, 1], [], []>} : vector<8x128xf32>, vector<128x128xf32>, vector<8x128xf32> -> vector<8x128xf32>
    %c0_3 = arith.constant 0 : index
    %c0_4 = arith.constant 0 : index
    %3 = vector.load %arg3[%c0_3, %c0_4] : memref<1x128xf32, #tpu.memory_space<vmem>>, vector<1x128xf32>
    %4 = vector.broadcast %3 : vector<1x128xf32> to vector<8x128xf32>
    %5 = arith.addf %2, %4 : vector<8x128xf32>
    %cst_5 = arith.constant 0.000000e+00 : f32
    %6 = vector.broadcast %cst_5 : f32 to vector<8x128xf32>
    %7 = arith.maximumf %5, %6 : vector<8x128xf32>
    %c0_6 = arith.constant 0 : index
    %c0_7 = arith.constant 0 : index
    %8 = vector.load %arg4[%c0_6, %c0_7] : memref<128x128xf32, #tpu.memory_space<vmem>>, vector<128x128xf32>
    %cst_8 = arith.constant dense<0.000000e+00> : vector<8x128xf32>
    %9 = tpu.matmul %7, %8, %cst_8 {dimension_numbers = #tpu.dot_dimension_numbers<[1], [0], [0], [1], [0, 0, 1, 1], [], []>} : vector<8x128xf32>, vector<128x128xf32>, vector<8x128xf32> -> vector<8x128xf32>
    %c0_9 = arith.constant 0 : index
    %c0_10 = arith.constant 0 : index
    %10 = vector.load %arg5[%c0_9, %c0_10] : memref<1x128xf32, #tpu.memory_space<vmem>>, vector<1x128xf32>
    %11 = vector.broadcast %10 : vector<1x128xf32> to vector<8x128xf32>
    %12 = arith.addf %9, %11 : vector<8x128xf32>
    %cst_11 = arith.constant 0.000000e+00 : f32
    %13 = vector.broadcast %cst_11 : f32 to vector<8x128xf32>
    %14 = arith.maximumf %12, %13 : vector<8x128xf32>
    %c0_12 = arith.constant 0 : index
    %c0_13 = arith.constant 0 : index
    %15 = vector.load %arg6[%c0_12, %c0_13] : memref<128x128xf32, #tpu.memory_space<vmem>>, vector<128x128xf32>
    %cst_14 = arith.constant dense<0.000000e+00> : vector<8x128xf32>
    %16 = tpu.matmul %14, %15, %cst_14 {dimension_numbers = #tpu.dot_dimension_numbers<[1], [0], [0], [1], [0, 0, 1, 1], [], []>} : vector<8x128xf32>, vector<128x128xf32>, vector<8x128xf32> -> vector<8x128xf32>
    %c0_15 = arith.constant 0 : index
    %c0_16 = arith.constant 0 : index
    %17 = vector.load %arg7[%c0_15, %c0_16] : memref<1x128xf32, #tpu.memory_space<vmem>>, vector<1x128xf32>
    %18 = vector.broadcast %17 : vector<1x128xf32> to vector<8x128xf32>
    %19 = arith.addf %16, %18 : vector<8x128xf32>
    %c0_17 = arith.constant 0 : index
    %c0_18 = arith.constant 0 : index
    %20 = vector.load %arg8[%c0_17, %c0_18] : memref<8x128xf32, #tpu.memory_space<vmem>>, vector<8x128xf32>
    tpu.vector_store %arg8[%c0_17, %c0_18], %19 {strides = array<i32>} : memref<8x128xf32, #tpu.memory_space<vmem>>, vector<8x128xf32>,
    return
  }
  func.func @transform_0(%arg0: i32) -> (i32, i32) {
    %c0_i32 = arith.constant 0 : i32
    %c0_i32_0 = arith.constant 0 : i32
    return %arg0, %c0_i32 : i32, i32
  }
  func.func @transform_1(%arg0: i32) -> (i32, i32) {
    %c0_i32 = arith.constant 0 : i32
    %c0_i32_0 = arith.constant 0 : i32
    %c0_i32_1 = arith.constant 0 : i32
    return %c0_i32, %c0_i32_0 : i32, i32
  }
  func.func @transform_2(%arg0: i32) -> (i32, i32) {
    %c0_i32 = arith.constant 0 : i32
    %c0_i32_0 = arith.constant 0 : i32
    %c0_i32_1 = arith.constant 0 : i32
    return %c0_i32, %c0_i32_0 : i32, i32
  }
  func.func @transform_3(%arg0: i32) -> (i32, i32) {
    %c0_i32 = arith.constant 0 : i32
    %c0_i32_0 = arith.constant 0 : i32
    %c0_i32_1 = arith.constant 0 : i32
    return %c0_i32, %c0_i32_0 : i32, i32
  }
  func.func @transform_4(%arg0: i32) -> (i32, i32) {
    %c0_i32 = arith.constant 0 : i32
    %c0_i32_0 = arith.constant 0 : i32
    %c0_i32_1 = arith.constant 0 : i32
    return %c0_i32, %c0_i32_0 : i32, i32
  }
  func.func @transform_5(%arg0: i32) -> (i32, i32) {
    %c0_i32 = arith.constant 0 : i32
    %c0_i32_0 = arith.constant 0 : i32
    %c0_i32_1 = arith.constant 0 : i32
    return %c0_i32, %c0_i32_0 : i32, i32
  }
  func.func @transform_6(%arg0: i32) -> (i32, i32) {
    %c0_i32 = arith.constant 0 : i32
    %c0_i32_0 = arith.constant 0 : i32
    %c0_i32_1 = arith.constant 0 : i32
    return %c0_i32, %c0_i32_0 : i32, i32
  }
  func.func @transform_7(%arg0: i32) -> (i32, i32) {
    %c0_i32 = arith.constant 0 : i32
    %c0_i32_0 = arith.constant 0 : i32
    return %arg0, %c0_i32 : i32, i32
  }
}

</mosaic_0001>

<llo_original>
// kernel: _fnn_forward_impl.1
$region0: #{_fnn_forward_impl.1}
  #allocation0 [shape = 'u32[]', space=smem, size = 0x4, offset = 0x4, fixed_abs, tag = 'smem constant byte address 0x4 - core index']
  #allocation1 [shape = 'u32[144,128]{1,0:T(1,128)}', space=vmem, size = 0x12000, scoped, tag = 'internal scratch']
  %s0 = inlined_call_operand.vmem [shape: f32[8,128], index: 0, kind: input, shape index: {}]
  %s1 = inlined_call_operand.hbm [shape: f32[128,128], index: 1, kind: input, shape index: {}]
  %s2 = inlined_call_operand.vmem [shape: f32[1,128], index: 2, kind: input, shape index: {}]
  %s3 = inlined_call_operand.hbm [shape: f32[128,128], index: 3, kind: input, shape index: {}]
  %s4 = inlined_call_operand.vmem [shape: f32[1,128], index: 4, kind: input, shape index: {}]
  %s5 = inlined_call_operand.hbm [shape: f32[128,128], index: 5, kind: input, shape index: {}]
  %s6 = inlined_call_operand.vmem [shape: f32[1,128], index: 6, kind: input, shape index: {}]
  %s7 = inlined_call_operand.hbm [shape: f32[8,128], index: 7, kind: output, shape index: {}]
  %s8 = sld [smem:[#allocation0]]
  $region50: #{_fnn_forward_impl.1} parent=0
    _
  %s10 = ssub.s32 1, %s8
  %s11 = scalar_select 0, %s10, %s8
  $region1: #{_fnn_forward_impl.1} parent=0
    #allocation2 [shape = 'u8[65536]{0}', space=vmem, size = 0x10000, scoped, tag = 'input window, operand 1, single buffered']
    #allocation3 [shape = 's32[1]{0}', space=sflag, size = 0x4, scoped, tag = 'scoped memory for _fnn_forward_impl.1']
    #allocation4 [shape = 's32[1]{0}', space=sflag, size = 0x4, scoped, tag = 'scoped memory for _fnn_forward_impl.1']
    #allocation5 [shape = 'u8[65536]{0}', space=vmem, size = 0x10000, scoped, tag = 'input window, operand 3, single buffered']
    #allocation6 [shape = 's32[1]{0}', space=sflag, size = 0x4, scoped, tag = 'scoped memory for _fnn_forward_impl.1']
    #allocation7 [shape = 'u8[65536]{0}', space=vmem, size = 0x10000, scoped, tag = 'input window, operand 5, single buffered']
    #allocation8 [shape = 'u8[4096]{0}', space=vmem, size = 0x1000, scoped, tag = 'output window, operand 0, single buffered']
    %12 = vsyncpa [#allocation3], 0
    %13 = vsyncpa [#allocation6], 0
    %14 = vsyncpa [#allocation4], 0
    // Predicated region
    $region2: #{_fnn_forward_impl.1} parent=1 // pred_check
      _
    $region3: #{_fnn_forward_impl.1} parent=1 // pred_check_branch
      %16 = sbr.rel (0) target = $region5
    $region4: #{_fnn_forward_impl.1} parent=1 // pred_region
      _
    $region5: #{_fnn_forward_impl.1} parent=1 // pred_fallthru
      _
    // Predicated region
    $region6: #{_fnn_forward_impl.1} parent=1 // pred_check
      _
    $region7: #{_fnn_forward_impl.1} parent=1 // pred_check_branch
      %18 = sbr.rel (0) target = $region9
    $region8: #{_fnn_forward_impl.1} parent=1 // pred_region
      %s20 = ssub.s32 2048, 2048
      %21 = vsyncadd [#allocation3], %s20
      %s22 = sshll.u32 [#allocation2], 4
      %s23 = int_to_ptr.vmem [resolvable:$true] %s22
      %28 = dma.hbm_to_vmem [thread:$0]  %s1, 2048, %s23, [#allocation3], 128, 128, 8
    $region9: #{_fnn_forward_impl.1} parent=1 // pred_fallthru
      _
    // Predicated region
    $region10: #{_fnn_forward_impl.1} parent=1 // pred_check
      _
    $region11: #{_fnn_forward_impl.1} parent=1 // pred_check_branch
      %30 = sbr.rel (0) target = $region13
    $region12: #{_fnn_forward_impl.1} parent=1 // pred_region
      _
    $region13: #{_fnn_forward_impl.1} parent=1 // pred_fallthru
      _
    // Predicated region
    $region14: #{_fnn_forward_impl.1} parent=1 // pred_check
      _
    $region15: #{_fnn_forward_impl.1} parent=1 // pred_check_branch
      %32 = sbr.rel (0) target = $region17
    $region16: #{_fnn_forward_impl.1} parent=1 // pred_region
      %s34 = ssub.s32 2048, 2048
      %35 = vsyncadd [#allocation6], %s34
      %s36 = sshll.u32 [#allocation5], 4
      %s37 = int_to_ptr.vmem [resolvable:$true] %s36
      %42 = dma.hbm_to_vmem [thread:$0]  %s3, 2048, %s37, [#allocation6], 128, 128, 8
    $region17: #{_fnn_forward_impl.1} parent=1 // pred_fallthru
      _
    // Predicated region
    $region18: #{_fnn_forward_impl.1} parent=1 // pred_check
      _
    $region19: #{_fnn_forward_impl.1} parent=1 // pred_check_branch
      %44 = sbr.rel (0) target = $region21
    $region20: #{_fnn_forward_impl.1} parent=1 // pred_region
      _
    $region21: #{_fnn_forward_impl.1} parent=1 // pred_fallthru
      _
    // Predicated region
    $region22: #{_fnn_forward_impl.1} parent=1 // pred_check
      _
    $region23: #{_fnn_forward_impl.1} parent=1 // pred_check_branch
      %46 = sbr.rel (0) target = $region25
    $region24: #{_fnn_forward_impl.1} parent=1 // pred_region
      %s48 = ssub.s32 2048, 2048
      %49 = vsyncadd [#allocation6], %s48
      %s50 = sshll.u32 [#allocation7], 4
      %s51 = int_to_ptr.vmem [resolvable:$true] %s50
      %56 = dma.hbm_to_vmem [thread:$0]  %s5, 2048, %s51, [#allocation6], 128, 128, 8
    $region25: #{_fnn_forward_impl.1} parent=1 // pred_fallthru
      _
    // Predicated region
    $region26: #{_fnn_forward_impl.1} parent=1 // pred_check
      _
    $region27: #{_fnn_forward_impl.1} parent=1 // pred_check_branch
      %58 = sbr.rel (0) target = $region29
    $region28: #{_fnn_forward_impl.1} parent=1 // pred_region
      _
    $region29: #{_fnn_forward_impl.1} parent=1 // pred_fallthru
      _
    // Predicated region
    $region30: #{_fnn_forward_impl.1} parent=1 // pred_check
      _
    $region31: #{_fnn_forward_impl.1} parent=1 // pred_check_branch
      %60 = sbr.rel (0) target = $region33
    $region32: #{_fnn_forward_impl.1} parent=1 // pred_region
      %61 = dma.done [#allocation3], 2048
    $region33: #{_fnn_forward_impl.1} parent=1 // pred_fallthru
      _
    // Predicated region
    $region34: #{_fnn_forward_impl.1} parent=1 // pred_check
      _
    $region35: #{_fnn_forward_impl.1} parent=1 // pred_check_branch
      %63 = sbr.rel (0) target = $region37
    $region36: #{_fnn_forward_impl.1} parent=1 // pred_region
      %64 = dma.done [#allocation6], 2048
    $region37: #{_fnn_forward_impl.1} parent=1 // pred_fallthru
      _
    // Predicated region
    $region38: #{_fnn_forward_impl.1} parent=1 // pred_check
      _
    $region39: #{_fnn_forward_impl.1} parent=1 // pred_check_branch
      %66 = sbr.rel (0) target = $region41
    $region40: #{_fnn_forward_impl.1} parent=1 // pred_region
      %67 = dma.done [#allocation6], 2048
    $region41: #{_fnn_forward_impl.1} parent=1 // pred_fallthru
      _
    %v68 = vld [vmem:[%s0] sm:$0xff]
    %v69 = vld [vmem:[#allocation2] sm:$0xff]
    %v70 = vld [vmem:[#allocation2 + $0x8] sm:$0xff]
    %v71 = vld [vmem:[#allocation2 + $0x10] sm:$0xff]
    %v72 = vld [vmem:[#allocation2 + $0x18] sm:$0xff]
    %v73 = vld [vmem:[#allocation2 + $0x20] sm:$0xff]
    %v74 = vld [vmem:[#allocation2 + $0x28] sm:$0xff]
    %v75 = vld [vmem:[#allocation2 + $0x30] sm:$0xff]
    %v76 = vld [vmem:[#allocation2 + $0x38] sm:$0xff]
    %v77 = vld [vmem:[#allocation2 + $0x40] sm:$0xff]
    %v78 = vld [vmem:[#allocation2 + $0x48] sm:$0xff]
    %v79 = vld [vmem:[#allocation2 + $0x50] sm:$0xff]
    %v80 = vld [vmem:[#allocation2 + $0x58] sm:$0xff]
    %v81 = vld [vmem:[#allocation2 + $0x60] sm:$0xff]
    %v82 = vld [vmem:[#allocation2 + $0x68] sm:$0xff]
    %v83 = vld [vmem:[#allocation2 + $0x70] sm:$0xff]
    %v84 = vld [vmem:[#allocation2 + $0x78] sm:$0xff]
    %v85 = vld [vmem:[%s2] sm:$0x1]
    %v87 = vlaneseq
    %v88 = vshrl.u32 %v87, 7
    %v89 = vsub.s32 0, %v88
    %v90 = vrot.slane %v85, %v89
    %92 = vmatprep.subr.mxu0 0.0
    %93 = vmatpush1.msra.mxu0 %v84
    %94 = vmatprep.subr.mxu0 0.0
    %95 = vmatpush1.msra.mxu0 %v83
    %96 = vmatprep.subr.mxu0 0.0
    %97 = vmatpush1.msra.mxu0 %v82
    %98 = vmatprep.subr.mxu0 0.0
    %99 = vmatpush1.msra.mxu0 %v81
    %100 = vmatprep.subr.mxu0 0.0
    %101 = vmatpush1.msra.mxu0 %v80
    %102 = vmatprep.subr.mxu0 0.0
    %103 = vmatpush1.msra.mxu0 %v79
    %104 = vmatprep.subr.mxu0 0.0
    %105 = vmatpush1.msra.mxu0 %v78
    %106 = vmatprep.subr.mxu0 0.0
    %107 = vmatpush1.msra.mxu0 %v77
    %108 = vmatprep.subr.mxu0 0.0
    %109 = vmatpush1.msra.mxu0 %v76
    %110 = vmatprep.subr.mxu0 0.0
    %111 = vmatpush1.msra.mxu0 %v75
    %112 = vmatprep.subr.mxu0 0.0
    %113 = vmatpush1.msra.mxu0 %v74
    %114 = vmatprep.subr.mxu0 0.0
    %115 = vmatpush1.msra.mxu0 %v73
    %116 = vmatprep.subr.mxu0 0.0
    %117 = vmatpush1.msra.mxu0 %v72
    %118 = vmatprep.subr.mxu0 0.0
    %119 = vmatpush1.msra.mxu0 %v71
    %120 = vmatprep.subr.mxu0 0.0
    %121 = vmatpush1.msra.mxu0 %v70
    %122 = vmatprep.subr.mxu0 0.0
    %123 = vmatpush1.msra.mxu0 %v69
    %124 = vmatprep.subr.mxu0 0.0
    %125 = vmatpush2.msra.mxu0 0.0
    %126 = vmatprep.subr.mxu0 0.0
    %127 = vmatpush2.msra.mxu0 0.0
    %128 = vmatprep.subr.mxu0 0.0
    %129 = vmatpush2.msra.mxu0 0.0
    %130 = vmatprep.subr.mxu0 0.0
    %131 = vmatpush2.msra.mxu0 0.0
    %132 = vmatprep.subr.mxu0 0.0
    %133 = vmatpush2.msra.mxu0 0.0
    %134 = vmatprep.subr.mxu0 0.0
    %135 = vmatpush2.msra.mxu0 0.0
    %136 = vmatprep.subr.mxu0 0.0
    %137 = vmatpush2.msra.mxu0 0.0
    %138 = vmatprep.subr.mxu0 0.0
    %139 = vmatpush2.msra.mxu0 0.0
    %140 = vmatprep.subr.mxu0 0.0
    %141 = vmatpush2.msra.mxu0 0.0
    %142 = vmatprep.subr.mxu0 0.0
    %143 = vmatpush2.msra.mxu0 0.0
    %144 = vmatprep.subr.mxu0 0.0
    %145 = vmatpush2.msra.mxu0 0.0
    %146 = vmatprep.subr.mxu0 0.0
    %147 = vmatpush2.msra.mxu0 0.0
    %148 = vmatprep.subr.mxu0 0.0
    %149 = vmatpush2.msra.mxu0 0.0
    %150 = vmatprep.subr.mxu0 0.0
    %151 = vmatpush2.msra.mxu0 0.0
    %152 = vmatprep.subr.mxu0 0.0
    %153 = vmatpush2.msra.mxu0 0.0
    %154 = vmatprep.subr.mxu0 0.0
    %155 = vmatpush2.msra.mxu0 0.0
    %156 = vmatprep.mubr.f32.mxu0 0.0
    %157 = vmatmul.mubr.f32.gmra.mxu0 %v68
    %v158 = vpop.f32.mrf.mxu0
    %v159 = vadd.f32 %v90, %v158
    %v160 = vpop.f32.mrf.mxu0
    %161 = vdwg.mxu0
    %v162 = vmax.f32 %v159, 0.0
    %v163 = vld [vmem:[#allocation5] sm:$0xff]
    %v164 = vld [vmem:[#allocation5 + $0x8] sm:$0xff]
    %v165 = vld [vmem:[#allocation5 + $0x10] sm:$0xff]
    %v166 = vld [vmem:[#allocation5 + $0x18] sm:$0xff]
    %v167 = vld [vmem:[#allocation5 + $0x20] sm:$0xff]
    %v168 = vld [vmem:[#allocation5 + $0x28] sm:$0xff]
    %v169 = vld [vmem:[#allocation5 + $0x30] sm:$0xff]
    %v170 = vld [vmem:[#allocation5 + $0x38] sm:$0xff]
    %v171 = vld [vmem:[#allocation5 + $0x40] sm:$0xff]
    %v172 = vld [vmem:[#allocation5 + $0x48] sm:$0xff]
    %v173 = vld [vmem:[#allocation5 + $0x50] sm:$0xff]
    %v174 = vld [vmem:[#allocation5 + $0x58] sm:$0xff]
    %v175 = vld [vmem:[#allocation5 + $0x60] sm:$0xff]
    %v176 = vld [vmem:[#allocation5 + $0x68] sm:$0xff]
    %v177 = vld [vmem:[#allocation5 + $0x70] sm:$0xff]
    %v178 = vld [vmem:[#allocation5 + $0x78] sm:$0xff]
    %v179 = vld [vmem:[%s4] sm:$0x1]
    %v181 = vlaneseq
    %v182 = vshrl.u32 %v181, 7
    %v183 = vsub.s32 0, %v182
    %v184 = vrot.slane %v179, %v183
    %186 = vmatprep.subr.mxu0 0.0
    %187 = vmatpush1.msra.mxu0 %v178
    %188 = vmatprep.subr.mxu0 0.0
    %189 = vmatpush1.msra.mxu0 %v177
    %190 = vmatprep.subr.mxu0 0.0
    %191 = vmatpush1.msra.mxu0 %v176
    %192 = vmatprep.subr.mxu0 0.0
    %193 = vmatpush1.msra.mxu0 %v175
    %194 = vmatprep.subr.mxu0 0.0
    %195 = vmatpush1.msra.mxu0 %v174
    %196 = vmatprep.subr.mxu0 0.0
    %197 = vmatpush1.msra.mxu0 %v173
    %198 = vmatprep.subr.mxu0 0.0
    %199 = vmatpush1.msra.mxu0 %v172
    %200 = vmatprep.subr.mxu0 0.0
    %201 = vmatpush1.msra.mxu0 %v171
    %202 = vmatprep.subr.mxu0 0.0
    %203 = vmatpush1.msra.mxu0 %v170
    %204 = vmatprep.subr.mxu0 0.0
    %205 = vmatpush1.msra.mxu0 %v169
    %206 = vmatprep.subr.mxu0 0.0
    %207 = vmatpush1.msra.mxu0 %v168
    %208 = vmatprep.subr.mxu0 0.0
    %209 = vmatpush1.msra.mxu0 %v167
    %210 = vmatprep.subr.mxu0 0.0
    %211 = vmatpush1.msra.mxu0 %v166
    %212 = vmatprep.subr.mxu0 0.0
    %213 = vmatpush1.msra.mxu0 %v165
    %214 = vmatprep.subr.mxu0 0.0
    %215 = vmatpush1.msra.mxu0 %v164
    %216 = vmatprep.subr.mxu0 0.0
    %217 = vmatpush1.msra.mxu0 %v163
    %218 = vmatprep.subr.mxu0 0.0
    %219 = vmatpush2.msra.mxu0 0.0
    %220 = vmatprep.subr.mxu0 0.0
    %221 = vmatpush2.msra.mxu0 0.0
    %222 = vmatprep.subr.mxu0 0.0
    %223 = vmatpush2.msra.mxu0 0.0
    %224 = vmatprep.subr.mxu0 0.0
    %225 = vmatpush2.msra.mxu0 0.0
    %226 = vmatprep.subr.mxu0 0.0
    %227 = vmatpush2.msra.mxu0 0.0
    %228 = vmatprep.subr.mxu0 0.0
    %229 = vmatpush2.msra.mxu0 0.0
    %230 = vmatprep.subr.mxu0 0.0
    %231 = vmatpush2.msra.mxu0 0.0
    %232 = vmatprep.subr.mxu0 0.0
    %233 = vmatpush2.msra.mxu0 0.0
    %234 = vmatprep.subr.mxu0 0.0
    %235 = vmatpush2.msra.mxu0 0.0
    %236 = vmatprep.subr.mxu0 0.0
    %237 = vmatpush2.msra.mxu0 0.0
    %238 = vmatprep.subr.mxu0 0.0
    %239 = vmatpush2.msra.mxu0 0.0
    %240 = vmatprep.subr.mxu0 0.0
    %241 = vmatpush2.msra.mxu0 0.0
    %242 = vmatprep.subr.mxu0 0.0
    %243 = vmatpush2.msra.mxu0 0.0
    %244 = vmatprep.subr.mxu0 0.0
    %245 = vmatpush2.msra.mxu0 0.0
    %246 = vmatprep.subr.mxu0 0.0
    %247 = vmatpush2.msra.mxu0 0.0
    %248 = vmatprep.subr.mxu0 0.0
    %249 = vmatpush2.msra.mxu0 0.0
    %250 = vmatprep.mubr.f32.mxu0 0.0
    %251 = vmatmul.mubr.f32.gmra.mxu0 %v162
    %v252 = vpop.f32.mrf.mxu0
    %v253 = vadd.f32 %v184, %v252
    %v254 = vpop.f32.mrf.mxu0
    %255 = vdwg.mxu0
    %v256 = vmax.f32 %v253, 0.0
    %v257 = vld [vmem:[#allocation7] sm:$0xff]
    %v258 = vld [vmem:[#allocation7 + $0x8] sm:$0xff]
    %v259 = vld [vmem:[#allocation7 + $0x10] sm:$0xff]
    %v260 = vld [vmem:[#allocation7 + $0x18] sm:$0xff]
    %v261 = vld [vmem:[#allocation7 + $0x20] sm:$0xff]
    %v262 = vld [vmem:[#allocation7 + $0x28] sm:$0xff]
    %v263 = vld [vmem:[#allocation7 + $0x30] sm:$0xff]
    %v264 = vld [vmem:[#allocation7 + $0x38] sm:$0xff]
    %v265 = vld [vmem:[#allocation7 + $0x40] sm:$0xff]
    %v266 = vld [vmem:[#allocation7 + $0x48] sm:$0xff]
    %v267 = vld [vmem:[#allocation7 + $0x50] sm:$0xff]
    %v268 = vld [vmem:[#allocation7 + $0x58] sm:$0xff]
    %v269 = vld [vmem:[#allocation7 + $0x60] sm:$0xff]
    %v270 = vld [vmem:[#allocation7 + $0x68] sm:$0xff]
    %v271 = vld [vmem:[#allocation7 + $0x70] sm:$0xff]
    %v272 = vld [vmem:[#allocation7 + $0x78] sm:$0xff]
    %v273 = vld [vmem:[%s6] sm:$0x1]
    %v275 = vlaneseq
    %v276 = vshrl.u32 %v275, 7
    %v277 = vsub.s32 0, %v276
    %v278 = vrot.slane %v273, %v277
    %280 = vmatprep.subr.mxu0 0.0
    %281 = vmatpush1.msra.mxu0 %v272
    %282 = vmatprep.subr.mxu0 0.0
    %283 = vmatpush1.msra.mxu0 %v271
    %284 = vmatprep.subr.mxu0 0.0
    %285 = vmatpush1.msra.mxu0 %v270
    %286 = vmatprep.subr.mxu0 0.0
    %287 = vmatpush1.msra.mxu0 %v269
    %288 = vmatprep.subr.mxu0 0.0
    %289 = vmatpush1.msra.mxu0 %v268
    %290 = vmatprep.subr.mxu0 0.0
    %291 = vmatpush1.msra.mxu0 %v267
    %292 = vmatprep.subr.mxu0 0.0
    %293 = vmatpush1.msra.mxu0 %v266
    %294 = vmatprep.subr.mxu0 0.0
    %295 = vmatpush1.msra.mxu0 %v265
    %296 = vmatprep.subr.mxu0 0.0
    %297 = vmatpush1.msra.mxu0 %v264
    %298 = vmatprep.subr.mxu0 0.0
    %299 = vmatpush1.msra.mxu0 %v263
    %300 = vmatprep.subr.mxu0 0.0
    %301 = vmatpush1.msra.mxu0 %v262
    %302 = vmatprep.subr.mxu0 0.0
    %303 = vmatpush1.msra.mxu0 %v261
    %304 = vmatprep.subr.mxu0 0.0
    %305 = vmatpush1.msra.mxu0 %v260
    %306 = vmatprep.subr.mxu0 0.0
    %307 = vmatpush1.msra.mxu0 %v259
    %308 = vmatprep.subr.mxu0 0.0
    %309 = vmatpush1.msra.mxu0 %v258
    %310 = vmatprep.subr.mxu0 0.0
    %311 = vmatpush1.msra.mxu0 %v257
    %312 = vmatprep.subr.mxu0 0.0
    %313 = vmatpush2.msra.mxu0 0.0
    %314 = vmatprep.subr.mxu0 0.0
    %315 = vmatpush2.msra.mxu0 0.0
    %316 = vmatprep.subr.mxu0 0.0
    %317 = vmatpush2.msra.mxu0 0.0
    %318 = vmatprep.subr.mxu0 0.0
    %319 = vmatpush2.msra.mxu0 0.0
    %320 = vmatprep.subr.mxu0 0.0
    %321 = vmatpush2.msra.mxu0 0.0
    %322 = vmatprep.subr.mxu0 0.0
    %323 = vmatpush2.msra.mxu0 0.0
    %324 = vmatprep.subr.mxu0 0.0
    %325 = vmatpush2.msra.mxu0 0.0
    %326 = vmatprep.subr.mxu0 0.0
    %327 = vmatpush2.msra.mxu0 0.0
    %328 = vmatprep.subr.mxu0 0.0
    %329 = vmatpush2.msra.mxu0 0.0
    %330 = vmatprep.subr.mxu0 0.0
    %331 = vmatpush2.msra.mxu0 0.0
    %332 = vmatprep.subr.mxu0 0.0
    %333 = vmatpush2.msra.mxu0 0.0
    %334 = vmatprep.subr.mxu0 0.0
    %335 = vmatpush2.msra.mxu0 0.0
    %336 = vmatprep.subr.mxu0 0.0
    %337 = vmatpush2.msra.mxu0 0.0
    %338 = vmatprep.subr.mxu0 0.0
    %339 = vmatpush2.msra.mxu0 0.0
    %340 = vmatprep.subr.mxu0 0.0
    %341 = vmatpush2.msra.mxu0 0.0
    %342 = vmatprep.subr.mxu0 0.0
    %343 = vmatpush2.msra.mxu0 0.0
    %344 = vmatprep.mubr.f32.mxu0 0.0
    %345 = vmatmul.mubr.f32.gmra.mxu0 %v256
    %v346 = vpop.f32.mrf.mxu0
    %v347 = vadd.f32 %v278, %v346
    %v348 = vpop.f32.mrf.mxu0
    %349 = vdwg.mxu0
    %350 = vst [vmem:[#allocation8] sm:$0xff] %v347
    // Predicated region
    $region42: #{_fnn_forward_impl.1} parent=1 // pred_check
      _
    $region43: #{_fnn_forward_impl.1} parent=1 // pred_check_branch
      %352 = sbr.rel (0) target = $region45
    $region44: #{_fnn_forward_impl.1} parent=1 // pred_region
      %s354 = ssub.s32 128, 128
      %355 = vsyncadd [#allocation4], %s354
      %s357 = sshll.u32 [#allocation8], 4
      %s358 = int_to_ptr.vmem [resolvable:$true] %s357
      %360 = dma.vmem_to_hbm [thread:$0]  %s358, 128, %s7, [#allocation4]
    $region45: #{_fnn_forward_impl.1} parent=1 // pred_fallthru
      _
    // Predicated region
    $region46: #{_fnn_forward_impl.1} parent=1 // pred_check
      _
    $region47: #{_fnn_forward_impl.1} parent=1 // pred_check_branch
      %362 = sbr.rel (0) target = $region49
    $region48: #{_fnn_forward_impl.1} parent=1 // pred_region
      %363 = dma.done [#allocation4], 128
    $region49: #{_fnn_forward_impl.1} parent=1 // pred_fallthru
      _
    %364 = vsyncpa [#allocation3], 1
    %365 = vsyncpa [#allocation6], 1
    %366 = vsyncpa [#allocation4], 1

// kernel: _fnn_forward_impl.1
$region0: #{_fnn_forward_impl.1}
  #allocation0 [shape = 'u32[]', space=smem, size = 0x4, offset = 0x4, fixed_abs, tag = 'smem constant byte address 0x4 - core index']
  #allocation1 [shape = 'u32[144,128]{1,0:T(1,128)}', space=vmem, size = 0x12000, scoped, tag = 'internal scratch']
  %s0 = inlined_call_operand.vmem [shape: f32[8,128], index: 0, kind: input, shape index: {}]
  %s1 = inlined_call_operand.hbm [shape: f32[128,128], index: 1, kind: input, shape index: {}]
  %s2 = inlined_call_operand.vmem [shape: f32[1,128], index: 2, kind: input, shape index: {}]
  %s3 = inlined_call_operand.hbm [shape: f32[128,128], index: 3, kind: input, shape index: {}]
  %s4 = inlined_call_operand.vmem [shape: f32[1,128], index: 4, kind: input, shape index: {}]
  %s5 = inlined_call_operand.hbm [shape: f32[128,128], index: 5, kind: input, shape index: {}]
  %s6 = inlined_call_operand.vmem [shape: f32[1,128], index: 6, kind: input, shape index: {}]
  %s7 = inlined_call_operand.hbm [shape: f32[8,128], index: 7, kind: output, shape index: {}]
  %s8 = sld [smem:[#allocation0]]
  $region50: #{_fnn_forward_impl.1} parent=0
    _
  %s10 = ssub.s32 1, %s8
  %s11 = scalar_select 0, %s10, %s8
  $region1: #{_fnn_forward_impl.1} parent=0
    #allocation2 [shape = 'u8[65536]{0}', space=vmem, size = 0x10000, scoped, tag = 'input window, operand 1, single buffered']
    #allocation3 [shape = 's32[1]{0}', space=sflag, size = 0x4, scoped, tag = 'scoped memory for _fnn_forward_impl.1']
    #allocation4 [shape = 's32[1]{0}', space=sflag, size = 0x4, scoped, tag = 'scoped memory for _fnn_forward_impl.1']
    #allocation5 [shape = 'u8[65536]{0}', space=vmem, size = 0x10000, scoped, tag = 'input window, operand 3, single buffered']
    #allocation6 [shape = 's32[1]{0}', space=sflag, size = 0x4, scoped, tag = 'scoped memory for _fnn_forward_impl.1']
    #allocation7 [shape = 'u8[65536]{0}', space=vmem, size = 0x10000, scoped, tag = 'input window, operand 5, single buffered']
    #allocation8 [shape = 'u8[4096]{0}', space=vmem, size = 0x1000, scoped, tag = 'output window, operand 0, single buffered']
    %12 = vsyncpa [#allocation3], 0
    %13 = vsyncpa [#allocation6], 0
    %14 = vsyncpa [#allocation4], 0
    // Predicated region
    $region2: #{_fnn_forward_impl.1} parent=1 // pred_check
      _
    $region3: #{_fnn_forward_impl.1} parent=1 // pred_check_branch
      %16 = sbr.rel (0) target = $region5
    $region4: #{_fnn_forward_impl.1} parent=1 // pred_region
      _
    $region5: #{_fnn_forward_impl.1} parent=1 // pred_fallthru
      _
    // Predicated region
    $region6: #{_fnn_forward_impl.1} parent=1 // pred_check
      _
    $region7: #{_fnn_forward_impl.1} parent=1 // pred_check_branch
      %18 = sbr.rel (0) target = $region9
    $region8: #{_fnn_forward_impl.1} parent=1 // pred_region
      %s20 = ssub.s32 2048, 2048
      %21 = vsyncadd [#allocation3], %s20
      %s22 = sshll.u32 [#allocation2], 4
      %s23 = int_to_ptr.vmem [resolvable:$true] %s22
      %28 = dma.hbm_to_vmem [thread:$0]  %s1, 2048, %s23, [#allocation3], 128, 128, 8
    $region9: #{_fnn_forward_impl.1} parent=1 // pred_fallthru
      _
    // Predicated region
    $region10: #{_fnn_forward_impl.1} parent=1 // pred_check
      _
    $region11: #{_fnn_forward_impl.1} parent=1 // pred_check_branch
      %30 = sbr.rel (0) target = $region13
    $region12: #{_fnn_forward_impl.1} parent=1 // pred_region
      _
    $region13: #{_fnn_forward_impl.1} parent=1 // pred_fallthru
      _
    // Predicated region
    $region14: #{_fnn_forward_impl.1} parent=1 // pred_check
      _
    $region15: #{_fnn_forward_impl.1} parent=1 // pred_check_branch
      %32 = sbr.rel (0) target = $region17
    $region16: #{_fnn_forward_impl.1} parent=1 // pred_region
      %s34 = ssub.s32 2048, 2048
      %35 = vsyncadd [#allocation6], %s34
      %s36 = sshll.u32 [#allocation5], 4
      %s37 = int_to_ptr.vmem [resolvable:$true] %s36
      %42 = dma.hbm_to_vmem [thread:$0]  %s3, 2048, %s37, [#allocation6], 128, 128, 8
    $region17: #{_fnn_forward_impl.1} parent=1 // pred_fallthru
      _
    // Predicated region
    $region18: #{_fnn_forward_impl.1} parent=1 // pred_check
      _
    $region19: #{_fnn_forward_impl.1} parent=1 // pred_check_branch
      %44 = sbr.rel (0) target = $region21
    $region20: #{_fnn_forward_impl.1} parent=1 // pred_region
      _
    $region21: #{_fnn_forward_impl.1} parent=1 // pred_fallthru
      _
    // Predicated region
    $region22: #{_fnn_forward_impl.1} parent=1 // pred_check
      _
    $region23: #{_fnn_forward_impl.1} parent=1 // pred_check_branch
      %46 = sbr.rel (0) target = $region25
    $region24: #{_fnn_forward_impl.1} parent=1 // pred_region
      %s48 = ssub.s32 2048, 2048
      %49 = vsyncadd [#allocation6], %s48
      %s50 = sshll.u32 [#allocation7], 4
      %s51 = int_to_ptr.vmem [resolvable:$true] %s50
      %56 = dma.hbm_to_vmem [thread:$0]  %s5, 2048, %s51, [#allocation6], 128, 128, 8
    $region25: #{_fnn_forward_impl.1} parent=1 // pred_fallthru
      _
    // Predicated region
    $region26: #{_fnn_forward_impl.1} parent=1 // pred_check
      _
    $region27: #{_fnn_forward_impl.1} parent=1 // pred_check_branch
      %58 = sbr.rel (0) target = $region29
    $region28: #{_fnn_forward_impl.1} parent=1 // pred_region
      _
    $region29: #{_fnn_forward_impl.1} parent=1 // pred_fallthru
      _
    // Predicated region
    $region30: #{_fnn_forward_impl.1} parent=1 // pred_check
      _
    $region31: #{_fnn_forward_impl.1} parent=1 // pred_check_branch
      %60 = sbr.rel (0) target = $region33
    $region32: #{_fnn_forward_impl.1} parent=1 // pred_region
      %61 = dma.done [#allocation3], 2048
    $region33: #{_fnn_forward_impl.1} parent=1 // pred_fallthru
      _
    // Predicated region
    $region34: #{_fnn_forward_impl.1} parent=1 // pred_check
      _
    $region35: #{_fnn_forward_impl.1} parent=1 // pred_check_branch
      %63 = sbr.rel (0) target = $region37
    $region36: #{_fnn_forward_impl.1} parent=1 // pred_region
      %64 = dma.done [#allocation6], 2048
    $region37: #{_fnn_forward_impl.1} parent=1 // pred_fallthru
      _
    // Predicated region
    $region38: #{_fnn_forward_impl.1} parent=1 // pred_check
      _
    $region39: #{_fnn_forward_impl.1} parent=1 // pred_check_branch
      %66 = sbr.rel (0) target = $region41
    $region40: #{_fnn_forward_impl.1} parent=1 // pred_region
      %67 = dma.done [#allocation6], 2048
    $region41: #{_fnn_forward_impl.1} parent=1 // pred_fallthru
      _
    %v68 = vld [vmem:[%s0] sm:$0xff]
    %v69 = vld [vmem:[#allocation2] sm:$0xff]
    %v70 = vld [vmem:[#allocation2 + $0x8] sm:$0xff]
    %v71 = vld [vmem:[#allocation2 + $0x10] sm:$0xff]
    %v72 = vld [vmem:[#allocation2 + $0x18] sm:$0xff]
    %v73 = vld [vmem:[#allocation2 + $0x20] sm:$0xff]
    %v74 = vld [vmem:[#allocation2 + $0x28] sm:$0xff]
    %v75 = vld [vmem:[#allocation2 + $0x30] sm:$0xff]
    %v76 = vld [vmem:[#allocation2 + $0x38] sm:$0xff]
    %v77 = vld [vmem:[#allocation2 + $0x40] sm:$0xff]
    %v78 = vld [vmem:[#allocation2 + $0x48] sm:$0xff]
    %v79 = vld [vmem:[#allocation2 + $0x50] sm:$0xff]
    %v80 = vld [vmem:[#allocation2 + $0x58] sm:$0xff]
    %v81 = vld [vmem:[#allocation2 + $0x60] sm:$0xff]
    %v82 = vld [vmem:[#allocation2 + $0x68] sm:$0xff]
    %v83 = vld [vmem:[#allocation2 + $0x70] sm:$0xff]
    %v84 = vld [vmem:[#allocation2 + $0x78] sm:$0xff]
    %v85 = vld [vmem:[%s2] sm:$0x1]
    %v87 = vlaneseq
    %v88 = vshrl.u32 %v87, 7
    %v89 = vsub.s32 0, %v88
    %v90 = vrot.slane %v85, %v89
    %92 = vmatprep.subr.mxu0 0.0
    %93 = vmatpush1.msra.mxu0 %v84
    %94 = vmatprep.subr.mxu0 0.0
    %95 = vmatpush1.msra.mxu0 %v83
    %96 = vmatprep.subr.mxu0 0.0
    %97 = vmatpush1.msra.mxu0 %v82
    %98 = vmatprep.subr.mxu0 0.0
    %99 = vmatpush1.msra.mxu0 %v81
    %100 = vmatprep.subr.mxu0 0.0
    %101 = vmatpush1.msra.mxu0 %v80
    %102 = vmatprep.subr.mxu0 0.0
    %103 = vmatpush1.msra.mxu0 %v79
    %104 = vmatprep.subr.mxu0 0.0
    %105 = vmatpush1.msra.mxu0 %v78
    %106 = vmatprep.subr.mxu0 0.0
    %107 = vmatpush1.msra.mxu0 %v77
    %108 = vmatprep.subr.mxu0 0.0
    %109 = vmatpush1.msra.mxu0 %v76
    %110 = vmatprep.subr.mxu0 0.0
    %111 = vmatpush1.msra.mxu0 %v75
    %112 = vmatprep.subr.mxu0 0.0
    %113 = vmatpush1.msra.mxu0 %v74
    %114 = vmatprep.subr.mxu0 0.0
    %115 = vmatpush1.msra.mxu0 %v73
    %116 = vmatprep.subr.mxu0 0.0
    %117 = vmatpush1.msra.mxu0 %v72
    %118 = vmatprep.subr.mxu0 0.0
    %119 = vmatpush1.msra.mxu0 %v71
    %120 = vmatprep.subr.mxu0 0.0
    %121 = vmatpush1.msra.mxu0 %v70
    %122 = vmatprep.subr.mxu0 0.0
    %123 = vmatpush1.msra.mxu0 %v69
    %124 = vmatprep.subr.mxu0 0.0
    %125 = vmatpush2.msra.mxu0 0.0
    %126 = vmatprep.subr.mxu0 0.0
    %127 = vmatpush2.msra.mxu0 0.0
    %128 = vmatprep.subr.mxu0 0.0
    %129 = vmatpush2.msra.mxu0 0.0
    %130 = vmatprep.subr.mxu0 0.0
    %131 = vmatpush2.msra.mxu0 0.0
    %132 = vmatprep.subr.mxu0 0.0
    %133 = vmatpush2.msra.mxu0 0.0
    %134 = vmatprep.subr.mxu0 0.0
    %135 = vmatpush2.msra.mxu0 0.0
    %136 = vmatprep.subr.mxu0 0.0
    %137 = vmatpush2.msra.mxu0 0.0
    %138 = vmatprep.subr.mxu0 0.0
    %139 = vmatpush2.msra.mxu0 0.0
    %140 = vmatprep.subr.mxu0 0.0
    %141 = vmatpush2.msra.mxu0 0.0
    %142 = vmatprep.subr.mxu0 0.0
    %143 = vmatpush2.msra.mxu0 0.0
    %144 = vmatprep.subr.mxu0 0.0
    %145 = vmatpush2.msra.mxu0 0.0
    %146 = vmatprep.subr.mxu0 0.0
    %147 = vmatpush2.msra.mxu0 0.0
    %148 = vmatprep.subr.mxu0 0.0
    %149 = vmatpush2.msra.mxu0 0.0
    %150 = vmatprep.subr.mxu0 0.0
    %151 = vmatpush2.msra.mxu0 0.0
    %152 = vmatprep.subr.mxu0 0.0
    %153 = vmatpush2.msra.mxu0 0.0
    %154 = vmatprep.subr.mxu0 0.0
    %155 = vmatpush2.msra.mxu0 0.0
    %156 = vmatprep.mubr.f32.mxu0 0.0
    %157 = vmatmul.mubr.f32.gmra.mxu0 %v68
    %v158 = vpop.f32.mrf.mxu0
    %v159 = vadd.f32 %v90, %v158
    %v160 = vpop.f32.mrf.mxu0
    %161 = vdwg.mxu0
    %v162 = vmax.f32 %v159, 0.0
    %v163 = vld [vmem:[#allocation5] sm:$0xff]
    %v164 = vld [vmem:[#allocation5 + $0x8] sm:$0xff]
    %v165 = vld [vmem:[#allocation5 + $0x10] sm:$0xff]
    %v166 = vld [vmem:[#allocation5 + $0x18] sm:$0xff]
    %v167 = vld [vmem:[#allocation5 + $0x20] sm:$0xff]
    %v168 = vld [vmem:[#allocation5 + $0x28] sm:$0xff]
    %v169 = vld [vmem:[#allocation5 + $0x30] sm:$0xff]
    %v170 = vld [vmem:[#allocation5 + $0x38] sm:$0xff]
    %v171 = vld [vmem:[#allocation5 + $0x40] sm:$0xff]
    %v172 = vld [vmem:[#allocation5 + $0x48] sm:$0xff]
    %v173 = vld [vmem:[#allocation5 + $0x50] sm:$0xff]
    %v174 = vld [vmem:[#allocation5 + $0x58] sm:$0xff]
    %v175 = vld [vmem:[#allocation5 + $0x60] sm:$0xff]
    %v176 = vld [vmem:[#allocation5 + $0x68] sm:$0xff]
    %v177 = vld [vmem:[#allocation5 + $0x70] sm:$0xff]
    %v178 = vld [vmem:[#allocation5 + $0x78] sm:$0xff]
    %v179 = vld [vmem:[%s4] sm:$0x1]
    %v181 = vlaneseq
    %v182 = vshrl.u32 %v181, 7
    %v183 = vsub.s32 0, %v182
    %v184 = vrot.slane %v179, %v183
    %186 = vmatprep.subr.mxu0 0.0
    %187 = vmatpush1.msra.mxu0 %v178
    %188 = vmatprep.subr.mxu0 0.0
    %189 = vmatpush1.msra.mxu0 %v177
    %190 = vmatprep.subr.mxu0 0.0
    %191 = vmatpush1.msra.mxu0 %v176
    %192 = vmatprep.subr.mxu0 0.0
    %193 = vmatpush1.msra.mxu0 %v175
    %194 = vmatprep.subr.mxu0 0.0
    %195 = vmatpush1.msra.mxu0 %v174
    %196 = vmatprep.subr.mxu0 0.0
    %197 = vmatpush1.msra.mxu0 %v173
    %198 = vmatprep.subr.mxu0 0.0
    %199 = vmatpush1.msra.mxu0 %v172
    %200 = vmatprep.subr.mxu0 0.0
    %201 = vmatpush1.msra.mxu0 %v171
    %202 = vmatprep.subr.mxu0 0.0
    %203 = vmatpush1.msra.mxu0 %v170
    %204 = vmatprep.subr.mxu0 0.0
    %205 = vmatpush1.msra.mxu0 %v169
    %206 = vmatprep.subr.mxu0 0.0
    %207 = vmatpush1.msra.mxu0 %v168
    %208 = vmatprep.subr.mxu0 0.0
    %209 = vmatpush1.msra.mxu0 %v167
    %210 = vmatprep.subr.mxu0 0.0
    %211 = vmatpush1.msra.mxu0 %v166
    %212 = vmatprep.subr.mxu0 0.0
    %213 = vmatpush1.msra.mxu0 %v165
    %214 = vmatprep.subr.mxu0 0.0
    %215 = vmatpush1.msra.mxu0 %v164
    %216 = vmatprep.subr.mxu0 0.0
    %217 = vmatpush1.msra.mxu0 %v163
    %218 = vmatprep.subr.mxu0 0.0
    %219 = vmatpush2.msra.mxu0 0.0
    %220 = vmatprep.subr.mxu0 0.0
    %221 = vmatpush2.msra.mxu0 0.0
    %222 = vmatprep.subr.mxu0 0.0
    %223 = vmatpush2.msra.mxu0 0.0
    %224 = vmatprep.subr.mxu0 0.0
    %225 = vmatpush2.msra.mxu0 0.0
    %226 = vmatprep.subr.mxu0 0.0
    %227 = vmatpush2.msra.mxu0 0.0
    %228 = vmatprep.subr.mxu0 0.0
    %229 = vmatpush2.msra.mxu0 0.0
    %230 = vmatprep.subr.mxu0 0.0
    %231 = vmatpush2.msra.mxu0 0.0
    %232 = vmatprep.subr.mxu0 0.0
    %233 = vmatpush2.msra.mxu0 0.0
    %234 = vmatprep.subr.mxu0 0.0
    %235 = vmatpush2.msra.mxu0 0.0
    %236 = vmatprep.subr.mxu0 0.0
    %237 = vmatpush2.msra.mxu0 0.0
    %238 = vmatprep.subr.mxu0 0.0
    %239 = vmatpush2.msra.mxu0 0.0
    %240 = vmatprep.subr.mxu0 0.0
    %241 = vmatpush2.msra.mxu0 0.0
    %242 = vmatprep.subr.mxu0 0.0
    %243 = vmatpush2.msra.mxu0 0.0
    %244 = vmatprep.subr.mxu0 0.0
    %245 = vmatpush2.msra.mxu0 0.0
    %246 = vmatprep.subr.mxu0 0.0
    %247 = vmatpush2.msra.mxu0 0.0
    %248 = vmatprep.subr.mxu0 0.0
    %249 = vmatpush2.msra.mxu0 0.0
    %250 = vmatprep.mubr.f32.mxu0 0.0
    %251 = vmatmul.mubr.f32.gmra.mxu0 %v162
    %v252 = vpop.f32.mrf.mxu0
    %v253 = vadd.f32 %v184, %v252
    %v254 = vpop.f32.mrf.mxu0
    %255 = vdwg.mxu0
    %v256 = vmax.f32 %v253, 0.0
    %v257 = vld [vmem:[#allocation7] sm:$0xff]
    %v258 = vld [vmem:[#allocation7 + $0x8] sm:$0xff]
    %v259 = vld [vmem:[#allocation7 + $0x10] sm:$0xff]
    %v260 = vld [vmem:[#allocation7 + $0x18] sm:$0xff]
    %v261 = vld [vmem:[#allocation7 + $0x20] sm:$0xff]
    %v262 = vld [vmem:[#allocation7 + $0x28] sm:$0xff]
    %v263 = vld [vmem:[#allocation7 + $0x30] sm:$0xff]
    %v264 = vld [vmem:[#allocation7 + $0x38] sm:$0xff]
    %v265 = vld [vmem:[#allocation7 + $0x40] sm:$0xff]
    %v266 = vld [vmem:[#allocation7 + $0x48] sm:$0xff]
    %v267 = vld [vmem:[#allocation7 + $0x50] sm:$0xff]
    %v268 = vld [vmem:[#allocation7 + $0x58] sm:$0xff]
    %v269 = vld [vmem:[#allocation7 + $0x60] sm:$0xff]
    %v270 = vld [vmem:[#allocation7 + $0x68] sm:$0xff]
    %v271 = vld [vmem:[#allocation7 + $0x70] sm:$0xff]
    %v272 = vld [vmem:[#allocation7 + $0x78] sm:$0xff]
    %v273 = vld [vmem:[%s6] sm:$0x1]
    %v275 = vlaneseq
    %v276 = vshrl.u32 %v275, 7
    %v277 = vsub.s32 0, %v276
    %v278 = vrot.slane %v273, %v277
    %280 = vmatprep.subr.mxu0 0.0
    %281 = vmatpush1.msra.mxu0 %v272
    %282 = vmatprep.subr.mxu0 0.0
    %283 = vmatpush1.msra.mxu0 %v271
    %284 = vmatprep.subr.mxu0 0.0
    %285 = vmatpush1.msra.mxu0 %v270
    %286 = vmatprep.subr.mxu0 0.0
    %287 = vmatpush1.msra.mxu0 %v269
    %288 = vmatprep.subr.mxu0 0.0
    %289 = vmatpush1.msra.mxu0 %v268
    %290 = vmatprep.subr.mxu0 0.0
    %291 = vmatpush1.msra.mxu0 %v267
    %292 = vmatprep.subr.mxu0 0.0
    %293 = vmatpush1.msra.mxu0 %v266
    %294 = vmatprep.subr.mxu0 0.0
    %295 = vmatpush1.msra.mxu0 %v265
    %296 = vmatprep.subr.mxu0 0.0
    %297 = vmatpush1.msra.mxu0 %v264
    %298 = vmatprep.subr.mxu0 0.0
    %299 = vmatpush1.msra.mxu0 %v263
    %300 = vmatprep.subr.mxu0 0.0
    %301 = vmatpush1.msra.mxu0 %v262
    %302 = vmatprep.subr.mxu0 0.0
    %303 = vmatpush1.msra.mxu0 %v261
    %304 = vmatprep.subr.mxu0 0.0
    %305 = vmatpush1.msra.mxu0 %v260
    %306 = vmatprep.subr.mxu0 0.0
    %307 = vmatpush1.msra.mxu0 %v259
    %308 = vmatprep.subr.mxu0 0.0
    %309 = vmatpush1.msra.mxu0 %v258
    %310 = vmatprep.subr.mxu0 0.0
    %311 = vmatpush1.msra.mxu0 %v257
    %312 = vmatprep.subr.mxu0 0.0
    %313 = vmatpush2.msra.mxu0 0.0
    %314 = vmatprep.subr.mxu0 0.0
    %315 = vmatpush2.msra.mxu0 0.0
    %316 = vmatprep.subr.mxu0 0.0
    %317 = vmatpush2.msra.mxu0 0.0
    %318 = vmatprep.subr.mxu0 0.0
    %319 = vmatpush2.msra.mxu0 0.0
    %320 = vmatprep.subr.mxu0 0.0
    %321 = vmatpush2.msra.mxu0 0.0
    %322 = vmatprep.subr.mxu0 0.0
    %323 = vmatpush2.msra.mxu0 0.0
    %324 = vmatprep.subr.mxu0 0.0
    %325 = vmatpush2.msra.mxu0 0.0
    %326 = vmatprep.subr.mxu0 0.0
    %327 = vmatpush2.msra.mxu0 0.0
    %328 = vmatprep.subr.mxu0 0.0
    %329 = vmatpush2.msra.mxu0 0.0
    %330 = vmatprep.subr.mxu0 0.0
    %331 = vmatpush2.msra.mxu0 0.0
    %332 = vmatprep.subr.mxu0 0.0
    %333 = vmatpush2.msra.mxu0 0.0
    %334 = vmatprep.subr.mxu0 0.0
    %335 = vmatpush2.msra.mxu0 0.0
    %336 = vmatprep.subr.mxu0 0.0
    %337 = vmatpush2.msra.mxu0 0.0
    %338 = vmatprep.subr.mxu0 0.0
    %339 = vmatpush2.msra.mxu0 0.0
    %340 = vmatprep.subr.mxu0 0.0
    %341 = vmatpush2.msra.mxu0 0.0
    %342 = vmatprep.subr.mxu0 0.0
    %343 = vmatpush2.msra.mxu0 0.0
    %344 = vmatprep.mubr.f32.mxu0 0.0
    %345 = vmatmul.mubr.f32.gmra.mxu0 %v256
    %v346 = vpop.f32.mrf.mxu0
    %v347 = vadd.f32 %v278, %v346
    %v348 = vpop.f32.mrf.mxu0
    %349 = vdwg.mxu0
    %350 = vst [vmem:[#allocation8] sm:$0xff] %v347
    // Predicated region
    $region42: #{_fnn_forward_impl.1} parent=1 // pred_check
      _
    $region43: #{_fnn_forward_impl.1} parent=1 // pred_check_branch
      %352 = sbr.rel (0) target = $region45
    $region44: #{_fnn_forward_impl.1} parent=1 // pred_region
      %s354 = ssub.s32 128, 128
      %355 = vsyncadd [#allocation4], %s354
      %s357 = sshll.u32 [#allocation8], 4
      %s358 = int_to_ptr.vmem [resolvable:$true] %s357
      %360 = dma.vmem_to_hbm [thread:$0]  %s358, 128, %s7, [#allocation4]
    $region45: #{_fnn_forward_impl.1} parent=1 // pred_fallthru
      _
    // Predicated region
    $region46: #{_fnn_forward_impl.1} parent=1 // pred_check
      _
    $region47: #{_fnn_forward_impl.1} parent=1 // pred_check_branch
      %362 = sbr.rel (0) target = $region49
    $region48: #{_fnn_forward_impl.1} parent=1 // pred_region
      %363 = dma.done [#allocation4], 128
    $region49: #{_fnn_forward_impl.1} parent=1 // pred_fallthru
      _
    %364 = vsyncpa [#allocation3], 1
    %365 = vsyncpa [#allocation6], 1
    %366 = vsyncpa [#allocation4], 1

</llo_original>
